<compile_context>
chip_gen: v7x
topology: tpu7x:2x2x1
jax: 0.10.0
libtpu: 0.0.40
codegen_flags: <defaults>
</compile_context>

<pallas_src>
import functools

import jax
import jax.numpy as jnp
from jax import lax
from jax.experimental import pallas as pl
from jax.experimental.pallas import tpu as pltpu

_LANES = 128
_SUBLANES = 8
_DEFAULT_BLOCK_ROWS = 2048            # 2048 * 128 * 4 B = 1 MiB per f32 input tile
_VMEM_LIMIT_BYTES = 32 * 1024 * 1024  # comfortable on v5e/v6e/v7x


def _num_tc_splits():
    """2-way row split only on v7x (2 TensorCores/chip); 1 on v5e/v6e."""
    try:
        kind = jax.devices()[0].device_kind.lower()
    except Exception:
        return 1
    return 2 if ("v7" in kind or "tpu7" in kind) else 1


def _huber_kernel(x_ref, y_ref, out_ref, acc_ref, *,
                  delta, n_valid_rows, block_rows, steps_per_split,
                  last_block, needs_mask, has_duplicates):
    """One (block_rows, 128) tile of the Huber sum reduced into an (8,128) acc.

    x_ref / y_ref : VMEM (block_rows, 128) tiles (native dtype, cast to f32 here)
    out_ref       : VMEM (8, 128) f32 per-split partial-sum block
    acc_ref       : VMEM (8, 128) f32 scratch accumulator (persists across steps)
    """
    split = pl.program_id(0)
    step = pl.program_id(1)
    blk = split * steps_per_split + step          # un-clamped block id

    @pl.when(step == 0)
    def _init():
        acc_ref[...] = jnp.zeros_like(acc_ref)

    def _accumulate(masked):
        x = x_ref[...].astype(jnp.float32)
        y = y_ref[...].astype(jnp.float32)
        d = x - y
        ad = jnp.abs(d)
        if delta > 0.0:
            # baked 0.5/delta multiply instead of a per-element divide
            z = jnp.where(ad < delta, (0.5 / delta) * (d * d), ad - 0.5 * delta)
        else:
            # delta == 0 -> pure L1 (PyTorch smooth_l1_loss beta=0 convention)
            z = ad
        if masked:
            # Only the genuine last block of the array takes this path.
            row = lax.broadcasted_iota(jnp.int32, z.shape, 0)
            z = jnp.where(row < n_valid_rows - blk * block_rows, z, 0.0)
        # (block_rows,128) -> (block_rows//8, 8, 128) is a layout no-op; the
        # axis-0 sum is pure vreg adds (no XLU), landing in the (8,128) acc.
        zr = z.reshape(block_rows // _SUBLANES, _SUBLANES, _LANES)
        acc_ref[...] += jnp.sum(zr, axis=0)

    if needs_mask:
        @pl.when(blk < last_block)
        def _interior():                          # mask-free hot path
            _accumulate(masked=False)

        @pl.when(blk == last_block)
        def _edge():                              # partial last block
            _accumulate(masked=True)
        # blk > last_block (clamped duplicates) fall through: skipped entirely.
    elif has_duplicates:
        @pl.when(blk <= last_block)
        def _valid():
            _accumulate(masked=False)
    else:
        _accumulate(masked=False)

    @pl.when(step == pl.num_programs(1) - 1)
    def _finalize():
        out_ref[...] = acc_ref[...]


def huber_loss(x, y, delta, *, block_rows=_DEFAULT_BLOCK_ROWS):
    """Mean Huber / smooth-L1 loss between x and y (same arbitrary shape)."""
    assert x.shape == y.shape, "input and target must have the same shape"
    delta = float(delta)                 # trace-time constant, baked into kernel
    n_elems = int(x.size)

    xf = x.reshape(-1)
    yf = y.reshape(-1)

    # Zero-copy 2-D (rows, 128) view whenever n is a multiple of 128 and >= 1024.
    # Otherwise, a small zero pad (zeros contribute 0 to the Huber sum; the mean
    # divides by the TRUE n).  TODO(synk): element-masked 1-D blocks would
    # remove this residual pad/copy for non-128-multiple sizes as well.
    n_feed = n_elems
    if n_feed % _LANES:
        n_feed += _LANES - (n_feed % _LANES)
    n_feed = max(n_feed, _SUBLANES * _LANES)
    if n_feed != n_elems:
        xf = jnp.pad(xf, (0, n_feed - n_elems))
        yf = jnp.pad(yf, (0, n_feed - n_elems))

    rows = n_feed // _LANES              # >= 8
    x2 = xf.reshape(rows, _LANES)
    y2 = yf.reshape(rows, _LANES)

    # Big tiles (amortize ~0.35 us per grid step), multiple of 8 sublanes,
    # never larger than the array's row extent.
    block_rows = max(_SUBLANES, min(int(block_rows), (rows // _SUBLANES) * _SUBLANES))
    block_rows -= block_rows % _SUBLANES

    total_blocks = pl.cdiv(rows, block_rows)
    num_splits = min(_num_tc_splits(), total_blocks)   # 2 only on v7x
    steps_per_split = pl.cdiv(total_blocks, num_splits)
    last_block = total_blocks - 1
    needs_mask = (rows % block_rows) != 0
    has_duplicates = num_splits * steps_per_split > total_blocks

    if num_splits == 1:
        def in_map(c, i):                 # no clamp / duplicate blocks needed
            return (i, 0)
    else:
        def in_map(c, i):
            # Clamp so the DMA window always starts inside the array; clamped
            # (duplicate) blocks are skipped inside the kernel.
            return (jnp.minimum(c * steps_per_split + i, last_block), 0)

    kernel = functools.partial(
        _huber_kernel,
        delta=delta,
        n_valid_rows=rows,
        block_rows=block_rows,
        steps_per_split=steps_per_split,
        last_block=last_block,
        needs_mask=needs_mask,
        has_duplicates=has_duplicates,
    )

    out_rows = num_splits * _SUBLANES
    cost = pl.CostEstimate(
        flops=8 * n_elems,
        transcendentals=0,
        bytes_accessed=int(x2.size) * x2.dtype.itemsize
        + int(y2.size) * y2.dtype.itemsize
        + out_rows * _LANES * 4,
    )

    partial_sums = pl.pallas_call(
        kernel,
        out_shape=jax.ShapeDtypeStruct((out_rows, _LANES), jnp.float32),
        grid_spec=pltpu.PrefetchScalarGridSpec(
            num_scalar_prefetch=0,
            grid=(num_splits, steps_per_split),
            in_specs=[
                pl.BlockSpec((block_rows, _LANES), in_map),
                pl.BlockSpec((block_rows, _LANES), in_map),
            ],
            out_specs=pl.BlockSpec((_SUBLANES, _LANES), lambda c, i: (c, 0)),
            scratch_shapes=[pltpu.VMEM((_SUBLANES, _LANES), jnp.float32)],
        ),
        compiler_params=pltpu.CompilerParams(
            dimension_semantics=("parallel", "arbitrary"),
            vmem_limit_bytes=_VMEM_LIMIT_BYTES,
        ),
        cost_estimate=cost,
    )(x2, y2)

    # Final cross-lane reduce + mean over the TRUE element count.
    return jnp.sum(partial_sums) / jnp.float32(n_elems)


def huber_loss_ref(x, y, delta):
    d = x.astype(jnp.float32) - y.astype(jnp.float32)
    ad = jnp.abs(d)
    if float(delta) > 0.0:
        z = jnp.where(ad < delta, 0.5 * d * d / delta, ad - 0.5 * delta)
    else:
        z = ad
    return jnp.mean(z)


if __name__ == "__main__":
    key = jax.random.PRNGKey(0)
    kx, ky = jax.random.split(key)
    # (N, *) inputs — small conv-like shape
    x = jax.random.normal(kx, (2, 4, 16, 16), dtype=jnp.float32)
    y = jax.random.normal(ky, (2, 4, 16, 16), dtype=jnp.float32)
    delta = 1.0

    loss = jax.block_until_ready(huber_loss(x, y, delta))
    ref = jax.block_until_ready(huber_loss_ref(x, y, delta))

    assert loss.shape == (), f"expected scalar, got {loss.shape}"
    assert jnp.allclose(loss, ref, rtol=1e-5, atol=1e-6), (loss, ref)
    print("KERNEL_OK")
</pallas_src>

<mosaic_0001>
module attributes {stable_mosaic.version = 11 : i64} {
  func.func @_huber_kernel(%arg0: i32, %arg1: i32, %arg2: memref<16x128xf32, #tpu.memory_space<vmem>>, %arg3: memref<16x128xf32, #tpu.memory_space<vmem>>, %arg4: memref<8x128xf32, #tpu.memory_space<vmem>>, %arg5: memref<8x128xf32, #tpu.memory_space<vmem>>) attributes {dimension_semantics = [#tpu.dimension_semantics<parallel>, #tpu.dimension_semantics<arbitrary>], iteration_bounds = array<i64: 1, 1>, scalar_prefetch = 0 : i64, scratch_operands = 1 : i64, tpu.core_type = #tpu.core_type<tc>, window_params = [{transform_indices = @transform_0, window_bounds = array<i64: 16, 128>}, {transform_indices = @transform_1, window_bounds = array<i64: 16, 128>}, {transform_indices = @transform_2, window_bounds = array<i64: 8, 128>}]} {
    %c0_i32 = arith.constant 0 : i32
    %0 = arith.cmpi eq, %arg1, %c0_i32 : i32
    %1 = arith.extui %0 : i1 to i32
    %c0_i32_0 = arith.constant 0 : i32
    %2 = arith.cmpi ne, %1, %c0_i32_0 : i32
    scf.if %2 {
      %cst_13 = arith.constant 0.000000e+00 : f32
      %23 = vector.broadcast %cst_13 : f32 to vector<8x128xf32>
      %c0_14 = arith.constant 0 : index
      %c0_15 = arith.constant 0 : index
      %24 = vector.load %arg5[%c0_14, %c0_15] : memref<8x128xf32, #tpu.memory_space<vmem>>, vector<8x128xf32>
      tpu.vector_store %arg5[%c0_14, %c0_15], %23 {strides = array<i32>} : memref<8x128xf32, #tpu.memory_space<vmem>>, vector<8x128xf32>,
    } else {
    }
    %c0 = arith.constant 0 : index
    %c0_1 = arith.constant 0 : index
    %3 = vector.load %arg2[%c0, %c0_1] : memref<16x128xf32, #tpu.memory_space<vmem>>, vector<16x128xf32>
    %c0_2 = arith.constant 0 : index
    %c0_3 = arith.constant 0 : index
    %4 = vector.load %arg3[%c0_2, %c0_3] : memref<16x128xf32, #tpu.memory_space<vmem>>, vector<16x128xf32>
    %5 = arith.subf %3, %4 : vector<16x128xf32>
    %6 = math.absf %5 : vector<16x128xf32>
    %cst = arith.constant 1.000000e+00 : f32
    %7 = vector.broadcast %cst : f32 to vector<16x128xf32>
    %8 = arith.cmpf olt, %6, %7 : vector<16x128xf32>
    %9 = arith.mulf %5, %5 : vector<16x128xf32>
    %cst_4 = arith.constant 5.000000e-01 : f32
    %10 = vector.broadcast %cst_4 : f32 to vector<16x128xf32>
    %11 = arith.mulf %10, %9 : vector<16x128xf32>
    %cst_5 = arith.constant 5.000000e-01 : f32
    %12 = vector.broadcast %cst_5 : f32 to vector<16x128xf32>
    %13 = arith.subf %6, %12 : vector<16x128xf32>
    %14 = arith.select %8, %11, %13 : vector<16x128xi1>, vector<16x128xf32>
    %15 = vector.shape_cast %14 : vector<16x128xf32> to vector<2x8x128xf32>
    %c0_6 = arith.constant 0 : index
    %c0_7 = arith.constant 0 : index
    %16 = vector.load %arg5[%c0_6, %c0_7] : memref<8x128xf32, #tpu.memory_space<vmem>>, vector<8x128xf32>
    %cst_8 = arith.constant dense<0.000000e+00> : vector<8x128xf32>
    %17 = vector.multi_reduction <add>, %15, %cst_8 [0] : vector<2x8x128xf32> to vector<8x128xf32>
    %18 = arith.addf %16, %17 : vector<8x128xf32>
    %c0_9 = arith.constant 0 : index
    %c0_10 = arith.constant 0 : index
    %19 = vector.load %arg5[%c0_9, %c0_10] : memref<8x128xf32, #tpu.memory_space<vmem>>, vector<8x128xf32>
    tpu.vector_store %arg5[%c0_9, %c0_10], %18 {strides = array<i32>} : memref<8x128xf32, #tpu.memory_space<vmem>>, vector<8x128xf32>,
    %c0_i32_11 = arith.constant 0 : i32
    %20 = arith.cmpi eq, %arg1, %c0_i32_11 : i32
    %21 = arith.extui %20 : i1 to i32
    %c0_i32_12 = arith.constant 0 : i32
    %22 = arith.cmpi ne, %21, %c0_i32_12 : i32
    scf.if %22 {
      %c0_13 = arith.constant 0 : index
      %c0_14 = arith.constant 0 : index
      %23 = vector.load %arg5[%c0_13, %c0_14] : memref<8x128xf32, #tpu.memory_space<vmem>>, vector<8x128xf32>
      %c0_15 = arith.constant 0 : index
      %c0_16 = arith.constant 0 : index
      %24 = vector.load %arg4[%c0_15, %c0_16] : memref<8x128xf32, #tpu.memory_space<vmem>>, vector<8x128xf32>
      tpu.vector_store %arg4[%c0_15, %c0_16], %23 {strides = array<i32>} : memref<8x128xf32, #tpu.memory_space<vmem>>, vector<8x128xf32>,
    } else {
    }
    return
  }
  func.func @transform_0(%arg0: i32, %arg1: i32) -> (i32, i32) {
    %c0_i32 = arith.constant 0 : i32
    %c0_i32_0 = arith.constant 0 : i32
    return %arg1, %c0_i32 : i32, i32
  }
  func.func @transform_1(%arg0: i32, %arg1: i32) -> (i32, i32) {
    %c0_i32 = arith.constant 0 : i32
    %c0_i32_0 = arith.constant 0 : i32
    return %arg1, %c0_i32 : i32, i32
  }
  func.func @transform_2(%arg0: i32, %arg1: i32) -> (i32, i32) {
    %c0_i32 = arith.constant 0 : i32
    %c0_i32_0 = arith.constant 0 : i32
    return %arg0, %c0_i32 : i32, i32
  }
}

</mosaic_0001>

<llo_original>
// kernel: tpu_custom_call.1
$region0: #{tpu_custom_call.1}
  #allocation0 [shape = 'u32[]', space=smem, size = 0x4, offset = 0x4, fixed_abs, tag = 'smem constant byte address 0x4 - core index']
  #allocation1 [shape = 'u32[144,128]{1,0:T(1,128)}', space=vmem, size = 0x12000, scoped, tag = 'internal scratch']
  #allocation2 [shape = 'f32[8,128]{1,0:T(8,128)}', space=vmem, size = 0x1000, scoped, tag = 'scratch operand']
  %s0 = inlined_call_operand.hbm [shape: f32[16,128], index: 0, kind: input, shape index: {}]
  %s1 = inlined_call_operand.hbm [shape: f32[16,128], index: 1, kind: input, shape index: {}]
  %s2 = inlined_call_operand.hbm [shape: f32[8,128], index: 2, kind: output, shape index: {}]
  %s3 = sld [smem:[#allocation0]]
  $region34: #{tpu_custom_call.1} parent=0
    _
  %s5 = ssub.s32 1, %s3
  %s6 = scalar_select 0, %s5, %s3
  $region1: #{tpu_custom_call.1} parent=0
    #allocation3 [shape = 'u8[8192]{0}', space=vmem, size = 0x2000, scoped, tag = 'input window, operand 0, single buffered']
    #allocation4 [shape = 's32[1]{0}', space=sflag, size = 0x4, scoped, tag = 'scoped memory for tpu_custom_call.1']
    #allocation5 [shape = 's32[1]{0}', space=sflag, size = 0x4, scoped, tag = 'scoped memory for tpu_custom_call.1']
    #allocation6 [shape = 'u8[8192]{0}', space=vmem, size = 0x2000, scoped, tag = 'input window, operand 1, single buffered']
    #allocation7 [shape = 's32[1]{0}', space=sflag, size = 0x4, scoped, tag = 'scoped memory for tpu_custom_call.1']
    #allocation8 [shape = 'u8[4096]{0}', space=vmem, size = 0x1000, scoped, tag = 'output window, operand 0, single buffered']
    %7 = vsyncpa [#allocation4], 0
    %8 = vsyncpa [#allocation7], 0
    %9 = vsyncpa [#allocation5], 0
    // Predicated region
    $region2: #{tpu_custom_call.1} parent=1 // pred_check
      _
    $region3: #{tpu_custom_call.1} parent=1 // pred_check_branch
      %11 = sbr.rel (0) target = $region5
    $region4: #{tpu_custom_call.1} parent=1 // pred_region
      %s13 = ssub.s32 256, 256
      %14 = vsyncadd [#allocation4], %s13
      %s15 = sshll.u32 [#allocation3], 4
      %s16 = int_to_ptr.vmem [resolvable:$true] %s15
      %21 = dma.hbm_to_vmem [thread:$0]  %s0, 256, %s16, [#allocation4], 128, 128, 8
    $region5: #{tpu_custom_call.1} parent=1 // pred_fallthru
      _
    // Predicated region
    $region6: #{tpu_custom_call.1} parent=1 // pred_check
      _
    $region7: #{tpu_custom_call.1} parent=1 // pred_check_branch
      %23 = sbr.rel (0) target = $region9
    $region8: #{tpu_custom_call.1} parent=1 // pred_region
      %s25 = ssub.s32 256, 256
      %26 = vsyncadd [#allocation7], %s25
      %s27 = sshll.u32 [#allocation6], 4
      %s28 = int_to_ptr.vmem [resolvable:$true] %s27
      %33 = dma.hbm_to_vmem [thread:$0]  %s1, 256, %s28, [#allocation7], 128, 128, 8
    $region9: #{tpu_custom_call.1} parent=1 // pred_fallthru
      _
    // Predicated region
    $region10: #{tpu_custom_call.1} parent=1 // pred_check
      _
    $region11: #{tpu_custom_call.1} parent=1 // pred_check_branch
      %35 = sbr.rel (0) target = $region13
    $region12: #{tpu_custom_call.1} parent=1 // pred_region
      %36 = dma.done [#allocation4], 256
    $region13: #{tpu_custom_call.1} parent=1 // pred_fallthru
      _
    // Predicated region
    $region14: #{tpu_custom_call.1} parent=1 // pred_check
      _
    $region15: #{tpu_custom_call.1} parent=1 // pred_check_branch
      %38 = sbr.rel (0) target = $region17
    $region16: #{tpu_custom_call.1} parent=1 // pred_region
      %39 = dma.done [#allocation7], 256
    $region17: #{tpu_custom_call.1} parent=1 // pred_fallthru
      _
    %p40 = scmp.eq.s32.totalorder 0, 0
    // Predicated region
    $region18: #{tpu_custom_call.1} parent=1 // pred_check
      %p41 = pneg %p40
    $region19: #{tpu_custom_call.1} parent=1 // pred_check_branch
      %43 = sbr.rel (%p41) target = $region21
    $region20: #{tpu_custom_call.1} parent=1 // pred_region
      %44 = vst [vmem:[#allocation2] sm:$0xff] 0.0
    $region21: #{tpu_custom_call.1} parent=1 // pred_fallthru
      _
    %v45 = vld [vmem:[#allocation3] sm:$0xff]
    %v46 = vld [vmem:[#allocation3 + $0x8] sm:$0xff]
    %v47 = vld [vmem:[#allocation6] sm:$0xff]
    %v48 = vld [vmem:[#allocation6 + $0x8] sm:$0xff]
    %v49 = vsub.f32 %v45, %v47
    %v50 = vsub.f32 %v46, %v48
    %v51 = vand.u32 2147483647, %v49
    %v52 = vand.u32 2147483647, %v50
    %vm53 = vcmp.lt.f32.partialorder %v51, 1.0
    %vm54 = vcmp.lt.f32.partialorder %v52, 1.0
    %v55 = vmul.f32 %v49, %v49
    %v56 = vmul.f32 %v50, %v50
    %v57 = vmul.f32 %v55, 0.5
    %v58 = vmul.f32 %v56, 0.5
    %v59 = vsub.f32 %v51, 0.5
    %v60 = vsub.f32 %v52, 0.5
    %v61 = vsel %vm53, %v57, %v59
    %v62 = vsel %vm54, %v58, %v60
    %v63 = vld [vmem:[#allocation2] sm:$0xff]
    %v64 = vadd.f32 %v61, %v62
    %v65 = vadd.f32 %v63, %v64
    %66 = vst [vmem:[#allocation2] sm:$0xff] %v65
    // Predicated region
    $region22: #{tpu_custom_call.1} parent=1 // pred_check
      %p67 = pneg %p40
    $region23: #{tpu_custom_call.1} parent=1 // pred_check_branch
      %69 = sbr.rel (%p67) target = $region25
    $region24: #{tpu_custom_call.1} parent=1 // pred_region
      %v70 = vld [vmem:[#allocation2] sm:$0xff]
      %71 = vst [vmem:[#allocation8] sm:$0xff] %v70
    $region25: #{tpu_custom_call.1} parent=1 // pred_fallthru
      _
    // Predicated region
    $region26: #{tpu_custom_call.1} parent=1 // pred_check
      _
    $region27: #{tpu_custom_call.1} parent=1 // pred_check_branch
      %73 = sbr.rel (0) target = $region29
    $region28: #{tpu_custom_call.1} parent=1 // pred_region
      %s75 = ssub.s32 128, 128
      %76 = vsyncadd [#allocation5], %s75
      %s78 = sshll.u32 [#allocation8], 4
      %s79 = int_to_ptr.vmem [resolvable:$true] %s78
      %81 = dma.vmem_to_hbm [thread:$0]  %s79, 128, %s2, [#allocation5]
    $region29: #{tpu_custom_call.1} parent=1 // pred_fallthru
      _
    // Predicated region
    $region30: #{tpu_custom_call.1} parent=1 // pred_check
      _
    $region31: #{tpu_custom_call.1} parent=1 // pred_check_branch
      %83 = sbr.rel (0) target = $region33
    $region32: #{tpu_custom_call.1} parent=1 // pred_region
      %84 = dma.done [#allocation5], 128
    $region33: #{tpu_custom_call.1} parent=1 // pred_fallthru
      _
    %85 = vsyncpa [#allocation4], 1
    %86 = vsyncpa [#allocation7], 1
    %87 = vsyncpa [#allocation5], 1

</llo_original>
